<compile_context>
chip_gen: v6e
topology: v6e:2x2x1
jax: 0.10.0
libtpu: 0.0.40
codegen_flags: <defaults>
</compile_context>

<pallas_src>
import functools

import jax
import jax.numpy as jnp
from jax.experimental import pallas as pl
from jax.experimental.pallas import tpu as pltpu

_LANES = 128                          # vreg lane width
_MAX_TILE_BYTES = 4 * 1024 * 1024     # per-input, per-buffer streaming tile
_VMEM_LIMIT_BYTES = 32 * 1024 * 1024  # 2 inputs x 2 bufs x 4 MiB + latent fits
_FUSE_LATENT_MAX_BYTES = 2 * 1024 * 1024


def _round_up(x: int, m: int) -> int:
    return ((x + m - 1) // m) * m


def _sublanes(dtype) -> int:
    # native second-minor tiling: 8 for 4-byte, 16 for 2-byte, 32 for 1-byte
    return max(8, 32 // jnp.dtype(dtype).itemsize)


def _default_ncores() -> int:
    """1 on single-TensorCore chips (v5e/v6e/"lite"), 2 otherwise (v4/v5p/v7x)."""
    try:
        kind = jax.devices()[0].device_kind.lower()
    except Exception:
        return 1
    if any(s in kind for s in ("lite", "v5e", "v6e")):
        return 1
    return 2


def _latent_loss_kernel(*refs, rec_weight, latent_weight, reg_type, n_rec,
                        n_rows, tile_rows, batch, n_var, fuse_latent,
                        mask_tail):
    if fuse_latent:
        out_ref, tgt_ref, lat_ref, partial_ref, acc_ref = refs
    else:
        out_ref, tgt_ref, partial_ref, acc_ref = refs
        lat_ref = None

    c = pl.program_id(0)                 # core / "parallel" shard
    i = pl.program_id(1)                 # reduction step ("arbitrary")
    n_steps = pl.num_programs(1)

    # ---- init per-core accumulator on its first reduction step -------------
    @pl.when(i == 0)
    def _():
        acc_ref[...] = jnp.zeros_like(acc_ref)

    # ---- streamed |output - target| partial sum (VPU-only per step) --------
    # subtract/abs in the streaming dtype (bf16 on v6e/v7x), accumulate in f32
    d = jnp.abs(out_ref[...] - tgt_ref[...]).astype(jnp.float32)
    if mask_tail:
        # ragged tail: zero out rows past the real data (also neutralizes the
        # garbage in padded partial blocks and fully-overhanging clamped blocks)
        start = (c * n_steps + i) * tile_rows
        valid = n_rows - start
        row_ids = jax.lax.broadcasted_iota(jnp.int32, (tile_rows, 1), 0)
        d = jnp.where(row_ids < valid, d, 0.0)
    # layout-preserving reshape: groups of 8 sublane rows -> vreg-wise adds
    acc_ref[...] += jnp.sum(d.reshape(-1, 8, _LANES), axis=0)

    # ---- epilogue: single cross-lane reduce (+ fused latent term on core 0) -
    @pl.when(i == n_steps - 1)
    def _():
        rec_partial = jnp.sum(acc_ref[...]) / n_rec
        partial_ref[...] = jnp.broadcast_to(
            rec_weight * rec_partial, partial_ref.shape).astype(jnp.float32)

        if fuse_latent:
            @pl.when(c == 0)               # only one core pays the latent work
            def _():
                lat = lat_ref[...].astype(jnp.float32)
                if reg_type == "l2":
                    sq = jnp.sum(lat * lat, axis=1, keepdims=True)     # (B, 1)
                    latent_loss = jnp.sum(jnp.sqrt(sq)) / batch
                elif reg_type == "l1":
                    latent_loss = jnp.sum(jnp.abs(lat)) / batch
                else:  # "variance": unbiased per-channel variance (ddof=1)
                    mean = jnp.sum(lat, axis=1, keepdims=True) / n_var
                    dd = lat - mean
                    var = jnp.sum(dd * dd, axis=1, keepdims=True) / (n_var - 1.0)
                    latent_loss = -jnp.sum(var) / lat.shape[0]
                partial_ref[...] = partial_ref[...] + jnp.broadcast_to(
                    latent_weight * latent_loss,
                    partial_ref.shape).astype(jnp.float32)


def latent_space_loss(output, target, latent,
                      rec_weight: float = 0.9,
                      latent_weight: float = 0.1,
                      reg_type: str = "l2",
                      *,
                      fuse_latent_max_bytes: int = _FUSE_LATENT_MAX_BYTES,
                      ncores=None,
                      max_tile_bytes: int = _MAX_TILE_BYTES):
    if abs(rec_weight + latent_weight - 1.0) > 1e-6:
        raise ValueError("Loss weights must sum to 1.0")
    reg_type = reg_type.lower()
    if reg_type not in ("l2", "l1", "variance"):
        raise ValueError(f"Unknown regularization type: {reg_type}")
    assert output.shape == target.shape

    B, C, H, W = latent.shape
    n_rec = output.size

    # ---- reconstruction stream: metadata-only reshape (no padded HBM copy) --
    flat_o = output.reshape(-1)
    flat_t = target.reshape(-1)
    rem = n_rec % _LANES
    if rem:
        # TODO(synk): rare ragged-lane tail; this pads (copies) the whole array.
        pad = _LANES - rem
        flat_o = jnp.pad(flat_o, (0, pad))
        flat_t = jnp.pad(flat_t, (0, pad))
    n_rows = flat_o.size // _LANES
    out2 = flat_o.reshape(n_rows, _LANES)
    tgt2 = flat_t.reshape(n_rows, _LANES)

    # ---- dtype-aware tiling (big tiles amortize per-step overhead) ----------
    sub = max(_sublanes(out2.dtype), _sublanes(tgt2.dtype))
    item = max(out2.dtype.itemsize, tgt2.dtype.itemsize)
    max_rows = max(sub, (max_tile_bytes // (_LANES * item)) // sub * sub)

    ncores = _default_ncores() if ncores is None else max(1, int(ncores))
    rows_per_core = -(-n_rows // ncores)
    tile_rows = min(max_rows, _round_up(rows_per_core, sub))
    nblocks = -(-n_rows // tile_rows)
    if nblocks < ncores:               # don't give a core zero real blocks
        ncores = 1
    steps = -(-nblocks // ncores)
    mask_tail = (ncores * steps * tile_rows != n_rows)
    last_block = nblocks - 1

    if ncores * steps == nblocks:
        rec_map = lambda c, i: (c * steps + i, 0)
    else:
        # clamp the (at most ncores-1) overhanging steps onto the last real
        # block; the kernel masks their contribution to exactly zero.
        rec_map = lambda c, i: (jnp.minimum(c * steps + i, last_block), 0)

    # ---- latent: fuse small latents into the kernel, hoist large ones -------
    fuse_latent = (latent.size * latent.dtype.itemsize) <= fuse_latent_max_bytes
    n_var = 1.0
    hoisted_latent_loss = None
    if fuse_latent:
        if reg_type == "variance":
            # per-channel reduction -> (B,H,W) on the lane axis
            lat2 = jnp.transpose(latent, (1, 0, 2, 3)).reshape(C, B * H * W)
            n_var = float(B * H * W)   # n_var == 1 -> inf/NaN, same as ddof=1 ref
        else:
            # per-sample reduction -> (C,H,W) on the lane axis
            lat2 = latent.reshape(B, C * H * W)
    else:
        latf = latent.astype(jnp.float32)
        if reg_type == "l2":
            hoisted_latent_loss = jnp.mean(
                jnp.sqrt(jnp.sum(latf * latf, axis=(1, 2, 3))))
        elif reg_type == "l1":
            hoisted_latent_loss = jnp.mean(jnp.sum(jnp.abs(latf), axis=(1, 2, 3)))
        else:
            hoisted_latent_loss = -jnp.mean(jnp.var(latf, axis=(0, 2, 3), ddof=1))

    kernel = functools.partial(
        _latent_loss_kernel,
        rec_weight=float(rec_weight),
        latent_weight=float(latent_weight),
        reg_type=reg_type,
        n_rec=float(n_rec),
        n_rows=n_rows,
        tile_rows=tile_rows,
        batch=float(B),
        n_var=n_var,
        fuse_latent=fuse_latent,
        mask_tail=mask_tail,
    )

    in_specs = [pl.BlockSpec((tile_rows, _LANES), rec_map),
                pl.BlockSpec((tile_rows, _LANES), rec_map)]
    operands = [out2, tgt2]
    if fuse_latent:
        # resident latent: constant block index -> fetched once, stays in VMEM
        in_specs.append(pl.BlockSpec(lat2.shape, lambda c, i: (0, 0)))
        operands.append(lat2)

    partials = pl.pallas_call(
        kernel,
        out_shape=jax.ShapeDtypeStruct((ncores, 8, _LANES), jnp.float32),
        grid_spec=pltpu.PrefetchScalarGridSpec(
            num_scalar_prefetch=0,
            grid=(ncores, steps),
            in_specs=in_specs,
            out_specs=pl.BlockSpec((1, 8, _LANES), lambda c, i: (c, 0, 0)),
            scratch_shapes=[pltpu.VMEM((8, _LANES), jnp.float32)],
        ),
        compiler_params=pltpu.CompilerParams(
            dimension_semantics=("parallel", "arbitrary"),
            vmem_limit_bytes=_VMEM_LIMIT_BYTES,
        ),
    )(*operands)

    total = jnp.sum(partials[:, 0, 0])
    if not fuse_latent:
        total = total + jnp.float32(latent_weight) * hoisted_latent_loss.astype(
            jnp.float32)
    return total


def _reference(output, target, latent, rec_weight=0.9, latent_weight=0.1,
               reg_type="l2"):
    o = output.astype(jnp.float32)
    t = target.astype(jnp.float32)
    l = latent.astype(jnp.float32)
    rec = jnp.mean(jnp.abs(o - t))
    if reg_type == "l2":
        ll = jnp.mean(jnp.sqrt(jnp.sum(l ** 2, axis=(1, 2, 3))))
    elif reg_type == "l1":
        ll = jnp.mean(jnp.sum(jnp.abs(l), axis=(1, 2, 3)))
    else:  # variance
        ll = -jnp.mean(jnp.var(l, axis=(0, 2, 3), ddof=1))
    return rec_weight * rec + latent_weight * ll


if __name__ == "__main__":
    key = jax.random.PRNGKey(0)
    k1, k2, k3 = jax.random.split(key, 3)
    output = jax.random.normal(k1, (2, 4, 16, 16), dtype=jnp.float32)
    target = jax.random.normal(k2, (2, 4, 16, 16), dtype=jnp.float32)
    latent = jax.random.normal(k3, (2, 8, 4, 4), dtype=jnp.float32)

    # 1) all regularizers, lane-aligned input, fused latent
    for reg in ("l2", "l1", "variance"):
        loss = latent_space_loss(output, target, latent, reg_type=reg)
        jax.block_until_ready(loss)
        ref = _reference(output, target, latent, reg_type=reg)
        assert jnp.allclose(loss, ref, atol=1e-5, rtol=1e-5), (reg, loss, ref)

    # 2) row-ragged case (n_rec % 128 == 0 but rows don't fill the tile)
    o2 = jax.random.normal(k1, (2, 5, 16, 16), dtype=jnp.float32)
    t2 = jax.random.normal(k2, (2, 5, 16, 16), dtype=jnp.float32)
    loss = latent_space_loss(o2, t2, latent, reg_type="l2")
    ref = _reference(o2, t2, latent, reg_type="l2")
    assert jnp.allclose(loss, ref, atol=1e-5, rtol=1e-5), ("ragged-rows", loss, ref)

    # 3) lane-ragged fallback (n_rec % 128 != 0)
    o3 = jax.random.normal(k1, (3, 3, 7, 5), dtype=jnp.float32)
    t3 = jax.random.normal(k2, (3, 3, 7, 5), dtype=jnp.float32)
    loss = latent_space_loss(o3, t3, latent, reg_type="l1")
    ref = _reference(o3, t3, latent, reg_type="l1")
    assert jnp.allclose(loss, ref, atol=1e-5, rtol=1e-5), ("ragged-lanes", loss, ref)

    # 4) bf16 streaming inputs (dtype-aware sublane rounding, bf16 VALU path)
    ob = output.astype(jnp.bfloat16)
    tb = target.astype(jnp.bfloat16)
    loss = latent_space_loss(ob, tb, latent, reg_type="l2")
    ref = _reference(ob, tb, latent, reg_type="l2")
    assert jnp.allclose(loss, ref, atol=2e-2, rtol=2e-2), ("bf16", loss, ref)

    # 5) hoisted-latent path (latent regularizer computed in wrapper XLA)
    loss = latent_space_loss(output, target, latent, reg_type="variance",
                             fuse_latent_max_bytes=0)
    ref = _reference(output, target, latent, reg_type="variance")
    assert jnp.allclose(loss, ref, atol=1e-5, rtol=1e-5), ("hoisted", loss, ref)

    # 6) forced 2-core grid + tiny tiles: multi-step accumulation, clamped
    #    index map for the overhanging step, masked partial tail
    loss = latent_space_loss(o2, t2, latent, reg_type="l1",
                             ncores=2, max_tile_bytes=8 * _LANES * 4)
    ref = _reference(o2, t2, latent, reg_type="l1")
    assert jnp.allclose(loss, ref, atol=1e-5, rtol=1e-5), ("2core", loss, ref)

    print("KERNEL_OK")
</pallas_src>

<mosaic_0001>
module attributes {stable_mosaic.version = 11 : i64} {
  func.func @_latent_loss_kernel(%arg0: i32, %arg1: i32, %arg2: memref<8x128xf32, #tpu.memory_space<vmem>>, %arg3: memref<8x128xf32, #tpu.memory_space<vmem>>, %arg4: memref<2x128xf32, #tpu.memory_space<vmem>>, %arg5: memref<1x8x128xf32, #tpu.memory_space<vmem>>, %arg6: memref<8x128xf32, #tpu.memory_space<vmem>>) attributes {dimension_semantics = [#tpu.dimension_semantics<parallel>, #tpu.dimension_semantics<arbitrary>], iteration_bounds = array<i64: 2, 1>, scalar_prefetch = 0 : i64, scratch_operands = 1 : i64, tpu.core_type = #tpu.core_type<tc>, window_params = [{transform_indices = @transform_0, window_bounds = array<i64: 8, 128>}, {transform_indices = @transform_1, window_bounds = array<i64: 8, 128>}, {pipeline_mode = #tpu.pipeline_mode<synchronous>, transform_indices = @transform_2, window_bounds = array<i64: 2, 128>}, {transform_indices = @transform_3, window_bounds = array<i64: 1, 8, 128>}]} {
    %c0_i32 = arith.constant 0 : i32
    %0 = arith.cmpi eq, %arg1, %c0_i32 : i32
    %1 = arith.extui %0 : i1 to i32
    %c0_i32_0 = arith.constant 0 : i32
    %2 = arith.cmpi ne, %1, %c0_i32_0 : i32
    scf.if %2 {
      %cst_10 = arith.constant 0.000000e+00 : f32
      %15 = vector.broadcast %cst_10 : f32 to vector<8x128xf32>
      %c0_11 = arith.constant 0 : index
      %c0_12 = arith.constant 0 : index
      %16 = vector.load %arg6[%c0_11, %c0_12] : memref<8x128xf32, #tpu.memory_space<vmem>>, vector<8x128xf32>
      tpu.vector_store %arg6[%c0_11, %c0_12], %15 {strides = array<i32>} : memref<8x128xf32, #tpu.memory_space<vmem>>, vector<8x128xf32>,
    } else {
    }
    %c0 = arith.constant 0 : index
    %c0_1 = arith.constant 0 : index
    %3 = vector.load %arg2[%c0, %c0_1] : memref<8x128xf32, #tpu.memory_space<vmem>>, vector<8x128xf32>
    %c0_2 = arith.constant 0 : index
    %c0_3 = arith.constant 0 : index
    %4 = vector.load %arg3[%c0_2, %c0_3] : memref<8x128xf32, #tpu.memory_space<vmem>>, vector<8x128xf32>
    %5 = arith.subf %3, %4 : vector<8x128xf32>
    %6 = math.absf %5 : vector<8x128xf32>
    %c0_4 = arith.constant 0 : index
    %c0_5 = arith.constant 0 : index
    %7 = vector.load %arg6[%c0_4, %c0_5] : memref<8x128xf32, #tpu.memory_space<vmem>>, vector<8x128xf32>
    %8 = vector.shape_cast %6 : vector<8x128xf32> to vector<1x8x128xf32>
    %cst = arith.constant dense<0.000000e+00> : vector<8x128xf32>
    %9 = vector.multi_reduction <add>, %8, %cst [0] : vector<1x8x128xf32> to vector<8x128xf32>
    %10 = arith.addf %7, %9 : vector<8x128xf32>
    %c0_6 = arith.constant 0 : index
    %c0_7 = arith.constant 0 : index
    %11 = vector.load %arg6[%c0_6, %c0_7] : memref<8x128xf32, #tpu.memory_space<vmem>>, vector<8x128xf32>
    tpu.vector_store %arg6[%c0_6, %c0_7], %10 {strides = array<i32>} : memref<8x128xf32, #tpu.memory_space<vmem>>, vector<8x128xf32>,
    %c0_i32_8 = arith.constant 0 : i32
    %12 = arith.cmpi eq, %arg1, %c0_i32_8 : i32
    %13 = arith.extui %12 : i1 to i32
    %c0_i32_9 = arith.constant 0 : i32
    %14 = arith.cmpi ne, %13, %c0_i32_9 : i32
    scf.if %14 {
      %c0_10 = arith.constant 0 : index
      %c0_11 = arith.constant 0 : index
      %15 = vector.load %arg6[%c0_10, %c0_11] : memref<8x128xf32, #tpu.memory_space<vmem>>, vector<8x128xf32>
      %16 = vector.shape_cast %15 : vector<8x128xf32> to vector<1x8x128xf32>
      %cst_12 = arith.constant dense<0.000000e+00> : vector<1xf32>
      %17 = vector.multi_reduction <add>, %16, %cst_12 [1, 2] : vector<1x8x128xf32> to vector<1xf32>
      %18 = vector.shape_cast %17 : vector<1xf32> to vector<1x1x1xf32>
      %19 = vector.extract %18[0, 0, 0] : f32 from vector<1x1x1xf32>
      %cst_13 = arith.constant 2.048000e+03 : f32
      %20 = arith.divf %19, %cst_13 : f32
      %cst_14 = arith.constant 0.899999976 : f32
      %21 = arith.mulf %cst_14, %20 : f32
      %22 = vector.broadcast %21 : f32 to vector<1x8x128xf32>
      %c0_15 = arith.constant 0 : index
      %c0_16 = arith.constant 0 : index
      %c0_17 = arith.constant 0 : index
      %23 = vector.load %arg5[%c0_15, %c0_16, %c0_17] : memref<1x8x128xf32, #tpu.memory_space<vmem>>, vector<1x8x128xf32>
      tpu.vector_store %arg5[%c0_15, %c0_16, %c0_17], %22 {strides = array<i32>} : memref<1x8x128xf32, #tpu.memory_space<vmem>>, vector<1x8x128xf32>,
      %c0_i32_18 = arith.constant 0 : i32
      %24 = arith.cmpi eq, %arg0, %c0_i32_18 : i32
      %25 = arith.extui %24 : i1 to i32
      %c0_i32_19 = arith.constant 0 : i32
      %26 = arith.cmpi ne, %25, %c0_i32_19 : i32
      scf.if %26 {
        %c0_20 = arith.constant 0 : index
        %c0_21 = arith.constant 0 : index
        %27 = vector.load %arg4[%c0_20, %c0_21] : memref<2x128xf32, #tpu.memory_space<vmem>>, vector<2x128xf32>
        %28 = arith.mulf %27, %27 : vector<2x128xf32>
        %cst_22 = arith.constant dense<0.000000e+00> : vector<2xf32>
        %29 = vector.multi_reduction <add>, %28, %cst_22 [1] : vector<2x128xf32> to vector<2xf32>
        %30 = vector.shape_cast %29 : vector<2xf32> to vector<2x1xf32>
        %31 = math.sqrt %30 : vector<2x1xf32>
        %32 = vector.shape_cast %31 : vector<2x1xf32> to vector<1x2x1xf32>
        %cst_23 = arith.constant dense<0.000000e+00> : vector<1xf32>
        %33 = vector.multi_reduction <add>, %32, %cst_23 [1, 2] : vector<1x2x1xf32> to vector<1xf32>
        %34 = vector.shape_cast %33 : vector<1xf32> to vector<1x1x1xf32>
        %35 = vector.extract %34[0, 0, 0] : f32 from vector<1x1x1xf32>
        %cst_24 = arith.constant 2.000000e+00 : f32
        %36 = arith.divf %35, %cst_24 : f32
        %c0_25 = arith.constant 0 : index
        %c0_26 = arith.constant 0 : index
        %c0_27 = arith.constant 0 : index
        %37 = vector.load %arg5[%c0_25, %c0_26, %c0_27] : memref<1x8x128xf32, #tpu.memory_space<vmem>>, vector<1x8x128xf32>
        %cst_28 = arith.constant 1.000000e-01 : f32
        %38 = arith.mulf %cst_28, %36 : f32
        %39 = vector.broadcast %38 : f32 to vector<1x8x128xf32>
        %40 = arith.addf %37, %39 : vector<1x8x128xf32>
        %c0_29 = arith.constant 0 : index
        %c0_30 = arith.constant 0 : index
        %c0_31 = arith.constant 0 : index
        %41 = vector.load %arg5[%c0_29, %c0_30, %c0_31] : memref<1x8x128xf32, #tpu.memory_space<vmem>>, vector<1x8x128xf32>
        tpu.vector_store %arg5[%c0_29, %c0_30, %c0_31], %40 {strides = array<i32>} : memref<1x8x128xf32, #tpu.memory_space<vmem>>, vector<1x8x128xf32>,
      } else {
      }
    } else {
    }
    return
  }
  func.func @transform_0(%arg0: i32, %arg1: i32) -> (i32, i32) {
    %c1_i32 = arith.constant 1 : i32
    %0 = arith.muli %arg0, %c1_i32 : i32
    %1 = arith.addi %0, %arg1 : i32
    %c0_i32 = arith.constant 0 : i32
    %c0_i32_0 = arith.constant 0 : i32
    return %1, %c0_i32 : i32, i32
  }
  func.func @transform_1(%arg0: i32, %arg1: i32) -> (i32, i32) {
    %c1_i32 = arith.constant 1 : i32
    %0 = arith.muli %arg0, %c1_i32 : i32
    %1 = arith.addi %0, %arg1 : i32
    %c0_i32 = arith.constant 0 : i32
    %c0_i32_0 = arith.constant 0 : i32
    return %1, %c0_i32 : i32, i32
  }
  func.func @transform_2(%arg0: i32, %arg1: i32) -> (i32, i32) {
    %c0_i32 = arith.constant 0 : i32
    %c0_i32_0 = arith.constant 0 : i32
    %c0_i32_1 = arith.constant 0 : i32
    return %c0_i32, %c0_i32_0 : i32, i32
  }
  func.func @transform_3(%arg0: i32, %arg1: i32) -> (i32, i32, i32) {
    %c0_i32 = arith.constant 0 : i32
    %c0_i32_0 = arith.constant 0 : i32
    %c0_i32_1 = arith.constant 0 : i32
    return %arg0, %c0_i32, %c0_i32_0 : i32, i32, i32
  }
}

</mosaic_0001>

<llo_original>
// kernel: tpu_custom_call.1
$region0: #{tpu_custom_call.1}
  #allocation0 [shape = 'u32[]', space=smem, size = 0x4, offset = 0x4, fixed_abs, tag = 'smem constant byte address 0x4 - core index']
  #allocation1 [shape = 'u32[144,128]{1,0:T(1,128)}', space=vmem, size = 0x12000, scoped, tag = 'internal scratch']
  #allocation2 [shape = 'f32[8,128]{1,0:T(8,128)}', space=vmem, size = 0x1000, scoped, tag = 'scratch operand']
  %s0 = inlined_call_operand.hbm [shape: f32[16,128], index: 0, kind: input, shape index: {}]
  %s1 = inlined_call_operand.hbm [shape: f32[16,128], index: 1, kind: input, shape index: {}]
  %s2 = inlined_call_operand.vmem [shape: f32[2,128], index: 2, kind: input, shape index: {}]
  %s3 = inlined_call_operand.hbm [shape: f32[2,8,128], index: 3, kind: output, shape index: {}]
  %s4 = sld [smem:[#allocation0]]
  $region65: #{tpu_custom_call.1} parent=0
    _
  %s6 = ssub.s32 1, %s4
  %s7 = scalar_select 0, %s6, %s4
  $region1: #{tpu_custom_call.1} parent=0
    #allocation3 [shape = 'u8[8192]{0}', space=vmem, size = 0x2000, scoped, tag = 'input window, operand 0']
    #allocation4 [shape = 's32[2]{0}', space=sflag, size = 0x8, scoped, tag = 'scoped memory for tpu_custom_call.1']
    #allocation5 [shape = 's32[2]{0}', space=sflag, size = 0x8, scoped, tag = 'scoped memory for tpu_custom_call.1']
    #allocation6 [shape = 'u8[8192]{0}', space=vmem, size = 0x2000, scoped, tag = 'input window, operand 1']
    #allocation7 [shape = 's32[2]{0}', space=sflag, size = 0x8, scoped, tag = 'scoped memory for tpu_custom_call.1']
    #allocation8 [shape = 'u8[8192]{0}', space=vmem, size = 0x2000, scoped, tag = 'output window, operand 0']
    %8 = vsyncpa [#allocation4], 0
    %s9 = scalar_lea.sflag [#allocation4], 1
    %10 = vsyncpa %s9, 0
    %11 = vsyncpa [#allocation7], 0
    %s12 = scalar_lea.sflag [#allocation7], 1
    %13 = vsyncpa %s12, 0
    %14 = vsyncpa [#allocation5], 0
    %s15 = scalar_lea.sflag [#allocation5], 1
    %16 = vsyncpa %s15, 0
    loop: start=0, step=1, limit=4
    $region2: #{tpu_custom_call.1} parent=1 // loop_pre_header
      _
    $region3: #{tpu_custom_call.1} parent=1 // loop_header
      %s18 = sphi 0, %s22
      %p19 = scmp.ge.s32.totalorder %s18, 4
      %s25 = sphi 0, %s37
      %s26 = sphi 0, %s33
      %s27 = sphi 0, %s25
      %s28 = sphi 0, %s26
      %s29 = sphi 0, %s27
      %s30 = sphi 0, %s28
      %s42 = sphi 0, %s44
      %s45 = sphi 0, %s42
      %s46 = sphi 0, %s45
      %s62 = sphi 0, %s46
      %s70 = sphi 0, %s72
      %s73 = sphi 0, %s70
      %s74 = sphi 0, %s73
      %s90 = sphi 0, %s74
      %s94 = sphi 0, %s94
      %s96 = sphi 0, %s94
      %s97 = sphi 0, %s96
      %s111 = sphi 0, %s97
      %s117 = sphi 0, %s119
      %s120 = sphi 0, %s117
      %s121 = sphi 0, %s120
      %s137 = sphi 0, %s121
    $region4: #{tpu_custom_call.1} parent=1 // loop_header_branch
      %21 = sbr.rel (%p19) target = $region8
    $region5: #{tpu_custom_call.1} parent=1 // loop_body
      %s23 = ssub.s32 %s18, 1
      %s24 = ssub.s32 %s18, 2
      %s31 = sadd.s32 1, %s26
      %p32 = scmp.ge.s32.totalorder %s31, 1
      %s33 = scalar_select %p32, 0, %s31
      %s34 = sadd.s32 1, %s25
      %s35 = scalar_select %p32, %s34, %s25
      %p36 = scmp.ge.s32.totalorder %s35, 2
      %s37 = scalar_select %p36, 0, %s35
      %s38 = sadd.s32 %s25, %s26
      %s39 = sadd.s32 %s37, %s33
      %s40 = ssub.s32 %s38, %s39
      %p41 = scmp.eq.s32.totalorder %s40, 0
      %s43 = sadd.s32 %s42, 1
      %s44 = scalar_select %p41, %s42, %s43
      %p47 = pneg %p41
      %p48 = scmp.eq.s32.totalorder %s18, 1
      %p49 = por %p47, %p48
      %p50 = scmp.ne.s32.totalorder %s42, %s45
      %p51 = scmp.eq.s32.totalorder %s18, 0
      %p52 = por %p50, %p51
      %p53 = scmp.ne.s32.totalorder %s42, %s45
      %p54 = scmp.eq.s32.totalorder %s23, 1
      %p55 = por %p53, %p54
      %p56 = scmp.ne.s32.totalorder %s45, %s46
      %p57 = scmp.eq.s32.totalorder %s23, 0
      %p58 = por %p56, %p57
      %p59 = scmp.ne.s32.totalorder %s45, %s46
      %p60 = scmp.eq.s32.totalorder %s24, 1
      %p61 = por %p59, %p60
      %p63 = scmp.ne.s32.totalorder %s46, %s62
      %p64 = scmp.eq.s32.totalorder %s24, 0
      %p65 = por %p63, %p64
      %s66 = sadd.s32 %s25, %s26
      %s67 = sadd.s32 %s37, %s33
      %s68 = ssub.s32 %s66, %s67
      %p69 = scmp.eq.s32.totalorder %s68, 0
      %s71 = sadd.s32 %s70, 1
      %s72 = scalar_select %p69, %s70, %s71
      %p75 = pneg %p69
      %p76 = scmp.eq.s32.totalorder %s18, 1
      %p77 = por %p75, %p76
      %p78 = scmp.ne.s32.totalorder %s70, %s73
      %p79 = scmp.eq.s32.totalorder %s18, 0
      %p80 = por %p78, %p79
      %p81 = scmp.ne.s32.totalorder %s70, %s73
      %p82 = scmp.eq.s32.totalorder %s23, 1
      %p83 = por %p81, %p82
      %p84 = scmp.ne.s32.totalorder %s73, %s74
      %p85 = scmp.eq.s32.totalorder %s23, 0
      %p86 = por %p84, %p85
      %p87 = scmp.ne.s32.totalorder %s73, %s74
      %p88 = scmp.eq.s32.totalorder %s24, 1
      %p89 = por %p87, %p88
      %p91 = scmp.ne.s32.totalorder %s74, %s90
      %p92 = scmp.eq.s32.totalorder %s24, 0
      %p93 = por %p91, %p92
      %s95 = sadd.s32 %s94, 1
      %p98 = scmp.eq.s32.totalorder %s18, 1
      %p99 = scmp.ne.s32.totalorder %s94, %s96
      %p100 = scmp.eq.s32.totalorder %s18, 0
      %p101 = por %p99, %p100
      %p102 = scmp.ne.s32.totalorder %s94, %s96
      %p103 = scmp.eq.s32.totalorder %s23, 1
      %p104 = por %p102, %p103
      %p105 = scmp.ne.s32.totalorder %s96, %s97
      %p106 = scmp.eq.s32.totalorder %s23, 0
      %p107 = por %p105, %p106
      %p108 = scmp.ne.s32.totalorder %s96, %s97
      %p109 = scmp.eq.s32.totalorder %s24, 1
      %p110 = por %p108, %p109
      %p112 = scmp.ne.s32.totalorder %s97, %s111
      %p113 = scmp.eq.s32.totalorder %s24, 0
      %p114 = por %p112, %p113
      %s115 = ssub.s32 %s25, %s37
      %p116 = scmp.eq.s32.totalorder %s115, 0
      %s118 = sadd.s32 %s117, 1
      %s119 = scalar_select %p116, %s117, %s118
      %p122 = pneg %p116
      %p123 = scmp.eq.s32.totalorder %s18, 1
      %p124 = por %p122, %p123
      %p125 = scmp.ne.s32.totalorder %s117, %s120
      %p126 = scmp.eq.s32.totalorder %s18, 0
      %p127 = por %p125, %p126
      %p128 = scmp.ne.s32.totalorder %s117, %s120
      %p129 = scmp.eq.s32.totalorder %s23, 1
      %p130 = por %p128, %p129
      %p131 = scmp.ne.s32.totalorder %s120, %s121
      %p132 = scmp.eq.s32.totalorder %s23, 0
      %p133 = por %p131, %p132
      %p134 = scmp.ne.s32.totalorder %s120, %s121
      %p135 = scmp.eq.s32.totalorder %s24, 1
      %p136 = por %p134, %p135
      %p138 = scmp.ne.s32.totalorder %s121, %s137
      %p139 = scmp.eq.s32.totalorder %s24, 0
      %p140 = por %p138, %p139
      %p141 = scmp.le.s32.totalorder 1, %s18
      %p142 = scmp.lt.s32.totalorder %s18, 3
      %p143 = pnand %p141, %p142
      %p144 = pneg %p143
      // Predicated region
      $region9: #{tpu_custom_call.1} parent=5 // pred_check
        _
      $region10: #{tpu_custom_call.1} parent=5 // pred_check_branch
        %146 = sbr.rel (%p143) target = $region12
      $region11: #{tpu_custom_call.1} parent=5 // pred_region
        %s147 = ssub.s32 %s18, 1
        // Predicated region
        $region13: #{tpu_custom_call.1} parent=11 // pred_check
          %p148 = pneg %p107
        $region14: #{tpu_custom_call.1} parent=11 // pred_check_branch
          %150 = sbr.rel (%p148) target = $region16
        $region15: #{tpu_custom_call.1} parent=11 // pred_region
          _
        $region16: #{tpu_custom_call.1} parent=11 // pred_fallthru
          _
      $region12: #{tpu_custom_call.1} parent=5 // pred_fallthru
        _
      %p151 = scmp.lt.s32.totalorder %s18, 2
      // Predicated region
      $region17: #{tpu_custom_call.1} parent=5 // pred_check
        %p152 = pneg %p151
      $region18: #{tpu_custom_call.1} parent=5 // pred_check_branch
        %154 = sbr.rel (%p152) target = $region20
      $region19: #{tpu_custom_call.1} parent=5 // pred_region
        // Predicated region
        $region21: #{tpu_custom_call.1} parent=19 // pred_check
          %p155 = pneg %p52
        $region22: #{tpu_custom_call.1} parent=19 // pred_check_branch
          %157 = sbr.rel (%p155) target = $region24
        $region23: #{tpu_custom_call.1} parent=19 // pred_region
          %s158 = sand.u32 %s42, 1
          %s159 = scalar_lea.sflag [#allocation4], %s158
          %s160 = sand.u32 %s42, 1
          %s161 = smul.addr %s160, 8
          %s162 = scalar_lea.vmem [#allocation3], %s161
          %s163 = sadd.s32 %s25, %s26
          %s165 = ssub.s32 128, 128
          %166 = vsyncadd %s159, %s165
          %s167 = smul.addr %s163, 128
          %s168 = scalar_lea.hbm %s0, %s167
          %s170 = sshll.u32 %s162, 4
          %s171 = int_to_ptr.vmem [resolvable:$true] %s170
          %173 = dma.hbm_to_vmem [thread:$0]  %s168, 128, %s171, %s159
        $region24: #{tpu_custom_call.1} parent=19 // pred_fallthru
          _
        // Predicated region
        $region25: #{tpu_custom_call.1} parent=19 // pred_check
          %p174 = pneg %p80
        $region26: #{tpu_custom_call.1} parent=19 // pred_check_branch
          %176 = sbr.rel (%p174) target = $region28
        $region27: #{tpu_custom_call.1} parent=19 // pred_region
          %s177 = sand.u32 %s70, 1
          %s178 = scalar_lea.sflag [#allocation7], %s177
          %s179 = sand.u32 %s70, 1
          %s180 = smul.addr %s179, 8
          %s181 = scalar_lea.vmem [#allocation6], %s180
          %s182 = sadd.s32 %s25, %s26
          %s184 = ssub.s32 128, 128
          %185 = vsyncadd %s178, %s184
          %s186 = smul.addr %s182, 128
          %s187 = scalar_lea.hbm %s1, %s186
          %s189 = sshll.u32 %s181, 4
          %s190 = int_to_ptr.vmem [resolvable:$true] %s189
          %192 = dma.hbm_to_vmem [thread:$0]  %s187, 128, %s190, %s178
        $region28: #{tpu_custom_call.1} parent=19 // pred_fallthru
          _
      $region20: #{tpu_custom_call.1} parent=5 // pred_fallthru
        _
      %p193 = scmp.le.s32.totalorder 1, %s18
      %p194 = scmp.lt.s32.totalorder %s18, 3
      %p195 = pnand %p193, %p194
      %p196 = pneg %p195
      // Predicated region
      $region29: #{tpu_custom_call.1} parent=5 // pred_check
        _
      $region30: #{tpu_custom_call.1} parent=5 // pred_check_branch
        %198 = sbr.rel (%p195) target = $region32
      $region31: #{tpu_custom_call.1} parent=5 // pred_region
        %s199 = ssub.s32 %s18, 1
        %s200 = sand.u32 %s45, 1
        %s201 = scalar_lea.sflag [#allocation4], %s200
        %s202 = sand.u32 %s45, 1
        %s203 = smul.addr %s202, 8
        %s204 = scalar_lea.vmem [#allocation3], %s203
        // Predicated region
        $region33: #{tpu_custom_call.1} parent=31 // pred_check
          %p205 = pneg %p58
        $region34: #{tpu_custom_call.1} parent=31 // pred_check_branch
          %207 = sbr.rel (%p205) target = $region36
        $region35: #{tpu_custom_call.1} parent=31 // pred_region
          %208 = dma.done %s201, 128
        $region36: #{tpu_custom_call.1} parent=31 // pred_fallthru
          _
        %s209 = sand.u32 %s73, 1
        %s210 = scalar_lea.sflag [#allocation7], %s209
        %s211 = sand.u32 %s73, 1
        %s212 = smul.addr %s211, 8
        %s213 = scalar_lea.vmem [#allocation6], %s212
        // Predicated region
        $region37: #{tpu_custom_call.1} parent=31 // pred_check
          %p214 = pneg %p86
        $region38: #{tpu_custom_call.1} parent=31 // pred_check_branch
          %216 = sbr.rel (%p214) target = $region40
        $region39: #{tpu_custom_call.1} parent=31 // pred_region
          %217 = dma.done %s210, 128
        $region40: #{tpu_custom_call.1} parent=31 // pred_fallthru
          _
        %s218 = sand.u32 %s45, 1
        %s219 = scalar_lea.sflag [#allocation4], %s218
        %s220 = sand.u32 %s45, 1
        %s221 = smul.addr %s220, 8
        %s222 = scalar_lea.vmem [#allocation3], %s221
        %p223 = pneg %p58
        %p224 = pneg %p55
        %s225 = sand.u32 %s73, 1
        %s226 = scalar_lea.sflag [#allocation7], %s225
        %s227 = sand.u32 %s73, 1
        %s228 = smul.addr %s227, 8
        %s229 = scalar_lea.vmem [#allocation6], %s228
        %p230 = pneg %p86
        %p231 = pneg %p83
        %p232 = pneg %p107
        %p233 = pneg %p104
        %p234 = pneg %p133
        %p235 = pneg %p130
        %s236 = sand.u32 %s120, 1
        %s237 = scalar_lea.sflag [#allocation5], %s236
        %s238 = sand.u32 %s120, 1
        %s239 = smul.addr %s238, 8
        %s240 = scalar_lea.vmem [#allocation8], %s239
        %s241 = sadd.s32 %s27, %s28
        %s242 = sadd.s32 %s27, %s28
        %p243 = scmp.eq.s32.totalorder %s28, 0
        // Predicated region
        $region41: #{tpu_custom_call.1} parent=31 // pred_check
          %p244 = pneg %p243
        $region42: #{tpu_custom_call.1} parent=31 // pred_check_branch
          %246 = sbr.rel (%p244) target = $region44
        $region43: #{tpu_custom_call.1} parent=31 // pred_region
          %247 = vst [vmem:[#allocation2] sm:$0xff] 0.0
        $region44: #{tpu_custom_call.1} parent=31 // pred_fallthru
          _
        %v248 = vld [vmem:[%s204] sm:$0xff]
        %v249 = vld [vmem:[%s213] sm:$0xff]
        %v250 = vsub.f32 %v248, %v249
        %v251 = vand.u32 2147483647, %v250
        %v252 = vld [vmem:[#allocation2] sm:$0xff]
        %v253 = vadd.f32 %v251, 0.0
        %v254 = vadd.f32 %v252, %v253
        %255 = vst [vmem:[#allocation2] sm:$0xff] %v254
        // Predicated region
        $region45: #{tpu_custom_call.1} parent=31 // pred_check
          %p256 = pneg %p243
        $region46: #{tpu_custom_call.1} parent=31 // pred_check_branch
          %258 = sbr.rel (%p256) target = $region48
        $region47: #{tpu_custom_call.1} parent=31 // pred_region
          %v259 = vld [vmem:[#allocation2] sm:$0xff]
          %260 = vadd.xlane.f32.xlu0 %v259
          %v261 = vpop.xlane.xlu0 %260
          %v262 = vrot.slane %v261, 4
          %v263 = vadd.f32 %v261, %v262
          %v264 = vrot.slane %v263, 2
          %v265 = vadd.f32 %v263, %v264
          %v266 = vrot.slane %v265, 1
          %v267 = vadd.f32 %v265, %v266
          %s268 = vtos %v267
          %v269 = vrcp.pop 2048.0
          %s270 = vtos %v269
          %s271 = smul.f32 %s268, %s270
          %s272 = smul.f32 %s271, 0.9
          %v273 = vstv %s272
          %274 = vst [vmem:[%s240] sm:$0xff] %v273
          %p275 = scmp.eq.s32.totalorder %s27, 0
          // Predicated region
          $region49: #{tpu_custom_call.1} parent=47 // pred_check
            %p276 = pneg %p275
          $region50: #{tpu_custom_call.1} parent=47 // pred_check_branch
            %278 = sbr.rel (%p276) target = $region52
          $region51: #{tpu_custom_call.1} parent=47 // pred_region
            %v279 = vld [vmem:[%s2] sm:$0x3]
            %v280 = vmul.f32 %v279, %v279
            %vm281 = vcmask 1041408
            %v282 = vsel %vm281, %v280, 0.0
            %283 = vadd.xlane.f32.xlu0 %v282
            %v284 = vpop.xlane.xlu0 %283
            %v285 = vrsqrt.pop %v284
            %v286 = vmul.f32 %v284, %v285
            %vm287 = vcmp.eq.f32.partialorder %v284, inf
            %v288 = vsel %vm287, %v284, %v286
            %vm289 = vcmp.eq.f32.partialorder %v284, 0.0
            %v290 = vand.u32 %v284, 2147483648
            %v291 = vsel %vm289, %v290, %v288
            %vm292 = vcmask 1024
            %v293 = vsel %vm292, %v291, 0.0
            %294 = vadd.xlane.f32.xlu0 %v293
            %v295 = vpop.xlane.xlu0 %294
            %v296 = vrot.slane %v295, 4
            %v297 = vadd.f32 %v295, %v296
            %v298 = vrot.slane %v297, 2
            %v299 = vadd.f32 %v297, %v298
            %v300 = vrot.slane %v299, 1
            %v301 = vadd.f32 %v299, %v300
            %s302 = vtos %v301
            %v303 = vrcp.pop 2.0
            %s304 = vtos %v303
            %s305 = smul.f32 %s302, %s304
            %v306 = vld [vmem:[%s240] sm:$0xff]
            %s307 = smul.f32 %s305, 0.1
            %v308 = vstv %s307
            %v309 = vadd.f32 %v306, %v308
            %310 = vst [vmem:[%s240] sm:$0xff] %v309
          $region52: #{tpu_custom_call.1} parent=47 // pred_fallthru
            _
        $region48: #{tpu_custom_call.1} parent=31 // pred_fallthru
          _
        %s311 = sand.u32 %s120, 1
        %s312 = scalar_lea.sflag [#allocation5], %s311
        %s313 = sand.u32 %s120, 1
        %s314 = smul.addr %s313, 8
        %s315 = scalar_lea.vmem [#allocation8], %s314
        // Predicated region
        $region53: #{tpu_custom_call.1} parent=31 // pred_check
          %p316 = pneg %p130
        $region54: #{tpu_custom_call.1} parent=31 // pred_check_branch
          %318 = sbr.rel (%p316) target = $region56
        $region55: #{tpu_custom_call.1} parent=31 // pred_region
          %s320 = ssub.s32 128, 128
          %321 = vsyncadd %s312, %s320
          %s322 = smul.addr %s27, 128
          %s323 = scalar_lea.hbm %s3, %s322
          %s325 = sshll.u32 %s315, 4
          %s326 = int_to_ptr.vmem [resolvable:$true] %s325
          %328 = dma.vmem_to_hbm [thread:$0]  %s326, 128, %s323, %s312
        $region56: #{tpu_custom_call.1} parent=31 // pred_fallthru
          _
      $region32: #{tpu_custom_call.1} parent=5 // pred_fallthru
        _
      %p329 = scmp.le.s32.totalorder 2, %s18
      // Predicated region
      $region57: #{tpu_custom_call.1} parent=5 // pred_check
        %p330 = pneg %p329
      $region58: #{tpu_custom_call.1} parent=5 // pred_check_branch
        %332 = sbr.rel (%p330) target = $region60
      $region59: #{tpu_custom_call.1} parent=5 // pred_region
        %s333 = ssub.s32 %s18, 2
        // Predicated region
        $region61: #{tpu_custom_call.1} parent=59 // pred_check
          %p334 = pneg %p136
        $region62: #{tpu_custom_call.1} parent=59 // pred_check_branch
          %336 = sbr.rel (%p334) target = $region64
        $region63: #{tpu_custom_call.1} parent=59 // pred_region
          %s337 = sand.u32 %s121, 1
          %s338 = scalar_lea.sflag [#allocation5], %s337
          %s339 = sand.u32 %s121, 1
          %s340 = smul.addr %s339, 8
          %s341 = scalar_lea.vmem [#allocation8], %s340
          %342 = dma.done %s338, 128
        $region64: #{tpu_custom_call.1} parent=59 // pred_fallthru
          _
      $region60: #{tpu_custom_call.1} parent=5 // pred_fallthru
        _
    $region6: #{tpu_custom_call.1} parent=1 // loop_footer
      %s22 = sadd.s32 1, %s18
    $region7: #{tpu_custom_call.1} parent=1 // loop_footer_branch
      %17 = sbr.rel target = $region3
    $region8: #{tpu_custom_call.1} parent=1 // loop_exit
      _
    %343 = vsyncpa [#allocation4], 1
    %s344 = scalar_lea.sflag [#allocation4], 1
    %345 = vsyncpa %s344, 1
    %346 = vsyncpa [#allocation7], 1
    %s347 = scalar_lea.sflag [#allocation7], 1
    %348 = vsyncpa %s347, 1
    %349 = vsyncpa [#allocation5], 1
    %s350 = scalar_lea.sflag [#allocation5], 1
    %351 = vsyncpa %s350, 1

</llo_original>
